<compile_context>
chip_gen: v5e
topology: v5e:2x2
jax: 0.10.0
libtpu: 0.0.40
codegen_flags: <defaults>
</compile_context>

<pallas_src>
import numpy as np
import jax
import jax.numpy as jnp
from jax.experimental import pallas as pl
from jax.experimental.pallas import tpu as pltpu


# -----------------------------------------------------------------------------
# Packed-weight slab layout (row offsets, all multiples of 8).
# -----------------------------------------------------------------------------
OFF_W1  = 0     # (16, 128)  conv1 Toeplitz, acts on padded (TB,16) input
OFF_W2  = 16    # (128,128)  conv2 Toeplitz (rows 0:48, cols 0:64 used)
OFF_W3  = 144   # (128,128)  conv3 Toeplitz (rows 0:64, cols 0:64 used)
OFF_WF  = 272   # (128,128)  FUSED convEnd(Linear 64->64) @ dense1 feature part
OFF_WD2 = 400   # (128,128)  dense2
OFF_WD3 = 528   # (128,128)  dense3
W_ROWS  = 656

# Vector slab rows (16, 128):
#  0: wd1[:,0]   1: wd1[:,1]          (dense1 info columns)
#  2: b1 tiled(48)   3: b2 tiled(64)   4: b3 tiled(64)
#  5: fused dense1 bias = bd1 + wd1[:,2:] @ bE
#  6: bd2        7: bd3
#  8: wdE row    9: [bdE, 0, ...]
V_ROWS = 16


# -----------------------------------------------------------------------------
# Pallas kernel: whole forward pass for one batch tile.
# -----------------------------------------------------------------------------
def ebm_kernel(x_ref, w_ref, v_ref, out_ref):
    f32 = jnp.float32
    dot = lambda a, b: jnp.dot(a, b, preferred_element_type=f32)
    silu = lambda u: u * jax.nn.sigmoid(u)

    x = x_ref[...]                                                    # (TB, 16)

    # conv1/2/3 as block-Toeplitz matmuls; padded lanes stay exactly 0
    # (zero weight columns + zero bias padding, silu(0)=0).
    h = silu(dot(x, w_ref[OFF_W1:OFF_W1 + 16, :]) + v_ref[2:3, :])    # cols 48: = 0
    h = silu(dot(h, w_ref[OFF_W2:OFF_W2 + 128, :]) + v_ref[3:4, :])   # cols 64: = 0
    h = silu(dot(h, w_ref[OFF_W3:OFF_W3 + 128, :]) + v_ref[4:5, :])   # cols 64: = 0

    # Fused convEnd + dense1: feature matmul on MXU (convEnd's Linear folded in,
    # channel-major reshape permutation baked into the slab), info contribution
    # as two VPU broadcast FMAs.
    info = x[:, 0:1] * v_ref[0:1, :] + x[:, 1:2] * v_ref[1:2, :]      # (TB,128)
    h = silu(dot(h, w_ref[OFF_WF:OFF_WF + 128, :]) + info + v_ref[5:6, :])
    h = silu(dot(h, w_ref[OFF_WD2:OFF_WD2 + 128, :]) + v_ref[6:7, :])
    h = silu(dot(h, w_ref[OFF_WD3:OFF_WD3 + 128, :]) + v_ref[7:8, :])

    # denseEnd (128 -> 1) as VPU multiply + XLU lane reduction (no N=1 matmul).
    out_ref[...] = (jnp.sum(h * v_ref[8:9, :], axis=-1, keepdims=True)
                    + v_ref[9:10, 0:1])


# -----------------------------------------------------------------------------
# Parameter setup (deterministic, synthetic; PyTorch layouts kept for reference)
# -----------------------------------------------------------------------------
def spectral_normalize(w):
    # torch.nn.utils.spectral_norm divides the weight (flattened to 2-D with the
    # out-dim first) by its largest singular value.  Exact SVD stands in for
    # PyTorch's power iteration.
    # TODO(synk): power-iteration state (u, v buffers) is not reproduced here.
    w_np = np.asarray(w, dtype=np.float64)
    mat = w_np.reshape(w_np.shape[0], -1)
    sigma = np.linalg.svd(mat, compute_uv=False)[0]
    return jnp.asarray((w_np / sigma).astype(np.float32))


def init_torch_params(seed=0):
    key = jax.random.PRNGKey(seed)
    ks = list(jax.random.split(key, 16))

    def unif(k, shape, fan_in):
        b = 1.0 / np.sqrt(fan_in)
        return jax.random.uniform(k, shape, jnp.float32, minval=-b, maxval=b)

    p = {}
    p["w1"] = unif(ks[0], (8, 1, 3), 1 * 3);    p["b1"] = unif(ks[1], (8,), 1 * 3)
    p["w2"] = unif(ks[2], (16, 8, 3), 8 * 3);   p["b2"] = unif(ks[3], (16,), 8 * 3)
    p["w3"] = unif(ks[4], (32, 16, 3), 16 * 3); p["b3"] = unif(ks[5], (32,), 16 * 3)
    p["wE"] = unif(ks[6], (64, 64), 64);        p["bE"] = unif(ks[7], (64,), 64)
    p["wd1"] = unif(ks[8], (128, 66), 66);      p["bd1"] = unif(ks[9], (128,), 66)
    p["wd2"] = unif(ks[10], (128, 128), 128);   p["bd2"] = unif(ks[11], (128,), 128)
    p["wd3"] = unif(ks[12], (128, 128), 128);   p["bd3"] = unif(ks[13], (128,), 128)
    p["wdE"] = unif(ks[14], (1, 128), 128);     p["bdE"] = unif(ks[15], (1,), 128)

    # spectral_norm wraps conv1-3 and dense1-3 only (convEnd / denseEnd are raw).
    for name in ("w1", "w2", "w3", "wd1", "wd2", "wd3"):
        p[name] = spectral_normalize(p[name])
    return p


def to_kernel_params(p):
    """Build the packed (W_ROWS,128) matrix slab and (16,128) vector slab."""
    f64 = np.float64
    w1 = np.asarray(p["w1"], f64); b1 = np.asarray(p["b1"], f64)     # (8,1,3)
    w2 = np.asarray(p["w2"], f64); b2 = np.asarray(p["b2"], f64)     # (16,8,3)
    w3 = np.asarray(p["w3"], f64); b3 = np.asarray(p["b3"], f64)     # (32,16,3)
    wE = np.asarray(p["wE"], f64); bE = np.asarray(p["bE"], f64)     # (64,64)
    wd1 = np.asarray(p["wd1"], f64); bd1 = np.asarray(p["bd1"], f64)
    wd2 = np.asarray(p["wd2"], f64); bd2 = np.asarray(p["bd2"], f64)
    wd3 = np.asarray(p["wd3"], f64); bd3 = np.asarray(p["bd3"], f64)
    wdE = np.asarray(p["wdE"], f64); bdE = np.asarray(p["bdE"], f64)

    W = np.zeros((W_ROWS, 128), f64)

    # conv1 (Cin=1, Cout=8, k=3, Lout=6) on the padded (TB,16) input:
    # input column 2+t holds signal sample t; output column t_out*8 + c_out.
    for t in range(6):
        for k in range(3):
            W[OFF_W1 + 2 + t + k, t * 8:(t + 1) * 8] = w1[:, 0, k]
    # conv2 (8->16, k=3, Lout=4): input col (t+k)*8 + c_in, output col t*16 + c_out.
    for t in range(4):
        for k in range(3):
            W[OFF_W2 + (t + k) * 8:OFF_W2 + (t + k) * 8 + 8,
              t * 16:(t + 1) * 16] = w2[:, :, k].T
    # conv3 (16->32, k=3, Lout=2): input col (t+k)*16 + c_in, output col t*32 + c_out.
    for t in range(2):
        for k in range(3):
            W[OFF_W3 + (t + k) * 16:OFF_W3 + (t + k) * 16 + 16,
              t * 32:(t + 1) * 32] = w3[:, :, k].T
    # Fused convEnd + dense1 feature matmul.  PyTorch reshape(-1, 64) is
    # channel-major (torch flat index = c*2 + t); our conv3 layout is t*32 + c.
    # M[i, m] = sum_o wE[o, i] * wd1[m, 2 + o]  (torch-index rows i).
    M = wE.T @ wd1[:, 2:].T                                            # (64,128)
    for t in range(2):
        for c in range(32):
            W[OFF_WF + t * 32 + c, :] = M[c * 2 + t, :]
    # dense2, dense3.
    W[OFF_WD2:OFF_WD2 + 128, :] = wd2.T
    W[OFF_WD3:OFF_WD3 + 128, :] = wd3.T

    V = np.zeros((V_ROWS, 128), f64)
    V[0, :] = wd1[:, 0]
    V[1, :] = wd1[:, 1]
    V[2, 0:48] = np.tile(b1, 6)
    V[3, 0:64] = np.tile(b2, 4)
    V[4, 0:64] = np.tile(b3, 2)
    V[5, :] = bd1 + wd1[:, 2:] @ bE        # convEnd bias folded into dense1 bias
    V[6, :] = bd2
    V[7, :] = bd3
    V[8, :] = wdE[0, :]
    V[9, 0] = bdE[0]
    return jnp.asarray(W, jnp.float32), jnp.asarray(V, jnp.float32)


# -----------------------------------------------------------------------------
# Wrapper: batch grid, resident weights, padded batch tail.
# -----------------------------------------------------------------------------
def _round_up(n, m):
    return ((n + m - 1) // m) * m


def neural_net_forward(x, w_slab, v_slab, *, block_b=None):
    x = jnp.asarray(x, jnp.float32)
    B = x.shape[0]
    if block_b is None:
        block_b = min(1024, _round_up(B, 8))     # big tiles amortize grid overhead
    Bp = _round_up(max(B, block_b), block_b)

    # Pad batch to a multiple of the tile and features to 16 lanes (zeros are
    # exact no-ops through the Toeplitz conv1 weights).
    xp = jnp.zeros((Bp, 16), jnp.float32).at[:B, :x.shape[1]].set(x)

    out = pl.pallas_call(
        ebm_kernel,
        out_shape=jax.ShapeDtypeStruct((Bp, 1), jnp.float32),
        grid=(Bp // block_b,),
        in_specs=[
            pl.BlockSpec((block_b, 16), lambda i: (i, 0)),      # streamed
            pl.BlockSpec((W_ROWS, 128), lambda i: (0, 0)),      # resident weights
            pl.BlockSpec((V_ROWS, 128), lambda i: (0, 0)),      # resident vectors
        ],
        out_specs=pl.BlockSpec((block_b, 1), lambda i: (i, 0)),
        compiler_params=pltpu.CompilerParams(
            dimension_semantics=("parallel",)),
    )(xp, w_slab, v_slab)
    return out[:B]


# -----------------------------------------------------------------------------
# Pure-JAX reference (direct transcription of the PyTorch forward)
# -----------------------------------------------------------------------------
def reference_forward(x, p):
    silu = jax.nn.silu
    info = x[:, :2]
    h = x[:, 2:][:, None, :]                                   # (B, 1, 8) NCW

    def conv1d(h, w, b):
        K = w.shape[2]
        L = h.shape[2]
        cols = [jnp.einsum("bck,ock->bo", h[:, :, t:t + K], w) for t in range(L - K + 1)]
        return jnp.stack(cols, axis=-1) + b[None, :, None]

    h = silu(conv1d(h, p["w1"], p["b1"]))
    h = silu(conv1d(h, p["w2"], p["b2"]))
    h = silu(conv1d(h, p["w3"], p["b3"])).reshape(-1, 64)
    h = h @ p["wE"].T + p["bE"]
    h = jnp.concatenate([info, h], axis=1)
    h = silu(h @ p["wd1"].T + p["bd1"])
    h = silu(h @ p["wd2"].T + p["bd2"])
    h = silu(h @ p["wd3"].T + p["bd3"])
    return h @ p["wdE"].T + p["bdE"]


if __name__ == "__main__":
    torch_params = init_torch_params(seed=0)
    w_slab, v_slab = to_kernel_params(torch_params)

    # Main check: single-tile batch.
    B = 8
    x = jax.random.normal(jax.random.PRNGKey(0), (B, 10), jnp.float32)
    out = jax.block_until_ready(neural_net_forward(x, w_slab, v_slab))
    ref = jax.block_until_ready(reference_forward(x, torch_params))
    assert out.shape == (B, 1)
    np.testing.assert_allclose(np.asarray(out), np.asarray(ref), rtol=1e-4, atol=1e-4)

    # Exercise the batch grid: multiple blocks + ragged tail (B=20, TB=8 -> grid 3).
    B2 = 20
    x2 = jax.random.normal(jax.random.PRNGKey(1), (B2, 10), jnp.float32)
    out2 = jax.block_until_ready(neural_net_forward(x2, w_slab, v_slab, block_b=8))
    ref2 = jax.block_until_ready(reference_forward(x2, torch_params))
    np.testing.assert_allclose(np.asarray(out2), np.asarray(ref2), rtol=1e-4, atol=1e-4)

    print("KERNEL_OK")
</pallas_src>

<mosaic_0001>
module attributes {stable_mosaic.version = 11 : i64} {
  func.func @ebm_kernel(%arg0: i32, %arg1: memref<8x16xf32, #tpu.memory_space<vmem>>, %arg2: memref<656x128xf32, #tpu.memory_space<vmem>>, %arg3: memref<16x128xf32, #tpu.memory_space<vmem>>, %arg4: memref<8x1xf32, #tpu.memory_space<vmem>>) attributes {dimension_semantics = [#tpu.dimension_semantics<parallel>], iteration_bounds = array<i64: 1>, scalar_prefetch = 0 : i64, scratch_operands = 0 : i64, tpu.core_type = #tpu.core_type<tc>, window_params = [{transform_indices = @transform_0, window_bounds = array<i64: 8, 16>}, {pipeline_mode = #tpu.pipeline_mode<synchronous>, transform_indices = @transform_1, window_bounds = array<i64: 656, 128>}, {pipeline_mode = #tpu.pipeline_mode<synchronous>, transform_indices = @transform_2, window_bounds = array<i64: 16, 128>}, {transform_indices = @transform_3, window_bounds = array<i64: 8, 1>}]} {
    %c0 = arith.constant 0 : index
    %c0_0 = arith.constant 0 : index
    %0 = vector.load %arg1[%c0, %c0_0] : memref<8x16xf32, #tpu.memory_space<vmem>>, vector<8x16xf32>
    %c0_1 = arith.constant 0 : index
    %c0_2 = arith.constant 0 : index
    %1 = vector.load %arg2[%c0_1, %c0_2] : memref<656x128xf32, #tpu.memory_space<vmem>>, vector<16x128xf32>
    %cst = arith.constant dense<0.000000e+00> : vector<8x128xf32>
    %2 = tpu.matmul %0, %1, %cst {dimension_numbers = #tpu.dot_dimension_numbers<[1], [0], [0], [1], [0, 0, 1, 1], [], []>} : vector<8x16xf32>, vector<16x128xf32>, vector<8x128xf32> -> vector<8x128xf32>
    %c2 = arith.constant 2 : index
    %c0_3 = arith.constant 0 : index
    %3 = vector.load %arg3[%c2, %c0_3] : memref<16x128xf32, #tpu.memory_space<vmem>>, vector<1x128xf32>
    %4 = vector.broadcast %3 : vector<1x128xf32> to vector<8x128xf32>
    %5 = arith.addf %2, %4 : vector<8x128xf32>
    %6 = arith.negf %5 : vector<8x128xf32>
    %7 = math.exp %6 : vector<8x128xf32>
    %cst_4 = arith.constant 1.000000e+00 : f32
    %8 = vector.broadcast %cst_4 : f32 to vector<8x128xf32>
    %9 = arith.addf %8, %7 : vector<8x128xf32>
    %10 = arith.divf %8, %9 : vector<8x128xf32>
    %11 = arith.mulf %5, %10 : vector<8x128xf32>
    %c16 = arith.constant 16 : index
    %c0_5 = arith.constant 0 : index
    %12 = vector.load %arg2[%c16, %c0_5] : memref<656x128xf32, #tpu.memory_space<vmem>>, vector<128x128xf32>
    %cst_6 = arith.constant dense<0.000000e+00> : vector<8x128xf32>
    %13 = tpu.matmul %11, %12, %cst_6 {dimension_numbers = #tpu.dot_dimension_numbers<[1], [0], [0], [1], [0, 0, 1, 1], [], []>} : vector<8x128xf32>, vector<128x128xf32>, vector<8x128xf32> -> vector<8x128xf32>
    %c3 = arith.constant 3 : index
    %c0_7 = arith.constant 0 : index
    %14 = vector.load %arg3[%c3, %c0_7] : memref<16x128xf32, #tpu.memory_space<vmem>>, vector<1x128xf32>
    %15 = vector.broadcast %14 : vector<1x128xf32> to vector<8x128xf32>
    %16 = arith.addf %13, %15 : vector<8x128xf32>
    %17 = arith.negf %16 : vector<8x128xf32>
    %18 = math.exp %17 : vector<8x128xf32>
    %cst_8 = arith.constant 1.000000e+00 : f32
    %19 = vector.broadcast %cst_8 : f32 to vector<8x128xf32>
    %20 = arith.addf %19, %18 : vector<8x128xf32>
    %21 = arith.divf %19, %20 : vector<8x128xf32>
    %22 = arith.mulf %16, %21 : vector<8x128xf32>
    %c144 = arith.constant 144 : index
    %c0_9 = arith.constant 0 : index
    %23 = vector.load %arg2[%c144, %c0_9] : memref<656x128xf32, #tpu.memory_space<vmem>>, vector<128x128xf32>
    %cst_10 = arith.constant dense<0.000000e+00> : vector<8x128xf32>
    %24 = tpu.matmul %22, %23, %cst_10 {dimension_numbers = #tpu.dot_dimension_numbers<[1], [0], [0], [1], [0, 0, 1, 1], [], []>} : vector<8x128xf32>, vector<128x128xf32>, vector<8x128xf32> -> vector<8x128xf32>
    %c4 = arith.constant 4 : index
    %c0_11 = arith.constant 0 : index
    %25 = vector.load %arg3[%c4, %c0_11] : memref<16x128xf32, #tpu.memory_space<vmem>>, vector<1x128xf32>
    %26 = vector.broadcast %25 : vector<1x128xf32> to vector<8x128xf32>
    %27 = arith.addf %24, %26 : vector<8x128xf32>
    %28 = arith.negf %27 : vector<8x128xf32>
    %29 = math.exp %28 : vector<8x128xf32>
    %cst_12 = arith.constant 1.000000e+00 : f32
    %30 = vector.broadcast %cst_12 : f32 to vector<8x128xf32>
    %31 = arith.addf %30, %29 : vector<8x128xf32>
    %32 = arith.divf %30, %31 : vector<8x128xf32>
    %33 = arith.mulf %27, %32 : vector<8x128xf32>
    %34 = vector.extract_strided_slice %0 {offsets = [0, 0], sizes = [8, 1], strides = [1, 1]} : vector<8x16xf32> to vector<8x1xf32>
    %c0_13 = arith.constant 0 : index
    %c0_14 = arith.constant 0 : index
    %35 = vector.load %arg3[%c0_13, %c0_14] : memref<16x128xf32, #tpu.memory_space<vmem>>, vector<1x128xf32>
    %36 = vector.broadcast %34 : vector<8x1xf32> to vector<8x128xf32>
    %37 = vector.broadcast %35 : vector<1x128xf32> to vector<8x128xf32>
    %38 = arith.mulf %36, %37 : vector<8x128xf32>
    %39 = vector.extract_strided_slice %0 {offsets = [0, 1], sizes = [8, 1], strides = [1, 1]} : vector<8x16xf32> to vector<8x1xf32>
    %c1 = arith.constant 1 : index
    %c0_15 = arith.constant 0 : index
    %40 = vector.load %arg3[%c1, %c0_15] : memref<16x128xf32, #tpu.memory_space<vmem>>, vector<1x128xf32>
    %41 = vector.broadcast %39 : vector<8x1xf32> to vector<8x128xf32>
    %42 = vector.broadcast %40 : vector<1x128xf32> to vector<8x128xf32>
    %43 = arith.mulf %41, %42 : vector<8x128xf32>
    %44 = arith.addf %38, %43 : vector<8x128xf32>
    %c272 = arith.constant 272 : index
    %c0_16 = arith.constant 0 : index
    %45 = vector.load %arg2[%c272, %c0_16] : memref<656x128xf32, #tpu.memory_space<vmem>>, vector<128x128xf32>
    %cst_17 = arith.constant dense<0.000000e+00> : vector<8x128xf32>
    %46 = tpu.matmul %33, %45, %cst_17 {dimension_numbers = #tpu.dot_dimension_numbers<[1], [0], [0], [1], [0, 0, 1, 1], [], []>} : vector<8x128xf32>, vector<128x128xf32>, vector<8x128xf32> -> vector<8x128xf32>
    %47 = arith.addf %46, %44 : vector<8x128xf32>
    %c5 = arith.constant 5 : index
    %c0_18 = arith.constant 0 : index
    %48 = vector.load %arg3[%c5, %c0_18] : memref<16x128xf32, #tpu.memory_space<vmem>>, vector<1x128xf32>
    %49 = vector.broadcast %48 : vector<1x128xf32> to vector<8x128xf32>
    %50 = arith.addf %47, %49 : vector<8x128xf32>
    %51 = arith.negf %50 : vector<8x128xf32>
    %52 = math.exp %51 : vector<8x128xf32>
    %cst_19 = arith.constant 1.000000e+00 : f32
    %53 = vector.broadcast %cst_19 : f32 to vector<8x128xf32>
    %54 = arith.addf %53, %52 : vector<8x128xf32>
    %55 = arith.divf %53, %54 : vector<8x128xf32>
    %56 = arith.mulf %50, %55 : vector<8x128xf32>
    %c400 = arith.constant 400 : index
    %c0_20 = arith.constant 0 : index
    %57 = vector.load %arg2[%c400, %c0_20] : memref<656x128xf32, #tpu.memory_space<vmem>>, vector<128x128xf32>
    %cst_21 = arith.constant dense<0.000000e+00> : vector<8x128xf32>
    %58 = tpu.matmul %56, %57, %cst_21 {dimension_numbers = #tpu.dot_dimension_numbers<[1], [0], [0], [1], [0, 0, 1, 1], [], []>} : vector<8x128xf32>, vector<128x128xf32>, vector<8x128xf32> -> vector<8x128xf32>
    %c6 = arith.constant 6 : index
    %c0_22 = arith.constant 0 : index
    %59 = vector.load %arg3[%c6, %c0_22] : memref<16x128xf32, #tpu.memory_space<vmem>>, vector<1x128xf32>
    %60 = vector.broadcast %59 : vector<1x128xf32> to vector<8x128xf32>
    %61 = arith.addf %58, %60 : vector<8x128xf32>
    %62 = arith.negf %61 : vector<8x128xf32>
    %63 = math.exp %62 : vector<8x128xf32>
    %cst_23 = arith.constant 1.000000e+00 : f32
    %64 = vector.broadcast %cst_23 : f32 to vector<8x128xf32>
    %65 = arith.addf %64, %63 : vector<8x128xf32>
    %66 = arith.divf %64, %65 : vector<8x128xf32>
    %67 = arith.mulf %61, %66 : vector<8x128xf32>
    %c528 = arith.constant 528 : index
    %c0_24 = arith.constant 0 : index
    %68 = vector.load %arg2[%c528, %c0_24] : memref<656x128xf32, #tpu.memory_space<vmem>>, vector<128x128xf32>
    %cst_25 = arith.constant dense<0.000000e+00> : vector<8x128xf32>
    %69 = tpu.matmul %67, %68, %cst_25 {dimension_numbers = #tpu.dot_dimension_numbers<[1], [0], [0], [1], [0, 0, 1, 1], [], []>} : vector<8x128xf32>, vector<128x128xf32>, vector<8x128xf32> -> vector<8x128xf32>
    %c7 = arith.constant 7 : index
    %c0_26 = arith.constant 0 : index
    %70 = vector.load %arg3[%c7, %c0_26] : memref<16x128xf32, #tpu.memory_space<vmem>>, vector<1x128xf32>
    %71 = vector.broadcast %70 : vector<1x128xf32> to vector<8x128xf32>
    %72 = arith.addf %69, %71 : vector<8x128xf32>
    %73 = arith.negf %72 : vector<8x128xf32>
    %74 = math.exp %73 : vector<8x128xf32>
    %cst_27 = arith.constant 1.000000e+00 : f32
    %75 = vector.broadcast %cst_27 : f32 to vector<8x128xf32>
    %76 = arith.addf %75, %74 : vector<8x128xf32>
    %77 = arith.divf %75, %76 : vector<8x128xf32>
    %78 = arith.mulf %72, %77 : vector<8x128xf32>
    %c8 = arith.constant 8 : index
    %c0_28 = arith.constant 0 : index
    %79 = vector.load %arg3[%c8, %c0_28] : memref<16x128xf32, #tpu.memory_space<vmem>>, vector<1x128xf32>
    %80 = vector.broadcast %79 : vector<1x128xf32> to vector<8x128xf32>
    %81 = arith.mulf %78, %80 : vector<8x128xf32>
    %cst_29 = arith.constant dense<0.000000e+00> : vector<8xf32>
    %82 = vector.multi_reduction <add>, %81, %cst_29 [1] : vector<8x128xf32> to vector<8xf32>
    %83 = vector.shape_cast %82 : vector<8xf32> to vector<8x1xf32>
    %c9 = arith.constant 9 : index
    %c0_30 = arith.constant 0 : index
    %84 = vector.load %arg3[%c9, %c0_30] : memref<16x128xf32, #tpu.memory_space<vmem>>, vector<1x1xf32>
    %85 = vector.broadcast %84 : vector<1x1xf32> to vector<8x1xf32>
    %86 = arith.addf %83, %85 : vector<8x1xf32>
    %c0_31 = arith.constant 0 : index
    %c0_32 = arith.constant 0 : index
    %87 = vector.load %arg4[%c0_31, %c0_32] : memref<8x1xf32, #tpu.memory_space<vmem>>, vector<8x1xf32>
    tpu.vector_store %arg4[%c0_31, %c0_32], %86 {strides = array<i32>} : memref<8x1xf32, #tpu.memory_space<vmem>>, vector<8x1xf32>,
    return
  }
  func.func @transform_0(%arg0: i32) -> (i32, i32) {
    %c0_i32 = arith.constant 0 : i32
    %c0_i32_0 = arith.constant 0 : i32
    return %arg0, %c0_i32 : i32, i32
  }
  func.func @transform_1(%arg0: i32) -> (i32, i32) {
    %c0_i32 = arith.constant 0 : i32
    %c0_i32_0 = arith.constant 0 : i32
    %c0_i32_1 = arith.constant 0 : i32
    return %c0_i32, %c0_i32_0 : i32, i32
  }
  func.func @transform_2(%arg0: i32) -> (i32, i32) {
    %c0_i32 = arith.constant 0 : i32
    %c0_i32_0 = arith.constant 0 : i32
    %c0_i32_1 = arith.constant 0 : i32
    return %c0_i32, %c0_i32_0 : i32, i32
  }
  func.func @transform_3(%arg0: i32) -> (i32, i32) {
    %c0_i32 = arith.constant 0 : i32
    %c0_i32_0 = arith.constant 0 : i32
    return %arg0, %c0_i32 : i32, i32
  }
}

</mosaic_0001>

<llo_original>
// kernel: tpu_custom_call.1
$region0: #{tpu_custom_call.1}
  #allocation0 [shape = 'u32[]', space=smem, size = 0x4, offset = 0x4, fixed_abs, tag = 'smem constant byte address 0x4 - core index']
  #allocation1 [shape = 'u32[72,128]{1,0:T(1,128)}', space=vmem, size = 0x9000, scoped, tag = 'internal scratch']
  %s0 = inlined_call_operand.hbm [shape: f32[8,16], index: 0, kind: input, shape index: {}]
  %s1 = inlined_call_operand.hbm [shape: f32[656,128], index: 1, kind: input, shape index: {}]
  %s2 = inlined_call_operand.hbm [shape: f32[16,128], index: 2, kind: input, shape index: {}]
  %s3 = inlined_call_operand.vmem [shape: f32[8,1], index: 3, kind: output, shape index: {}]
  %s4 = sld [smem:[#allocation0]]
  $region34: #{tpu_custom_call.1} parent=0
    _
  %s6 = ssub.s32 1, %s4
  %s7 = scalar_select 0, %s6, %s4
  $region1: #{tpu_custom_call.1} parent=0
    #allocation2 [shape = 'u8[4096]{0}', space=vmem, size = 0x1000, scoped, tag = 'input window, operand 0, single buffered']
    #allocation3 [shape = 's32[1]{0}', space=sflag, size = 0x4, scoped, tag = 'scoped memory for tpu_custom_call.1']
    #allocation4 [shape = 'u8[335872]{0}', space=vmem, size = 0x52000, scoped, tag = 'input window, operand 1, single buffered']
    #allocation5 [shape = 's32[1]{0}', space=sflag, size = 0x4, scoped, tag = 'scoped memory for tpu_custom_call.1']
    #allocation6 [shape = 'u8[8192]{0}', space=vmem, size = 0x2000, scoped, tag = 'input window, operand 2, single buffered']
    %8 = vsyncpa [#allocation3], 0
    %9 = vsyncpa [#allocation5], 0
    // Predicated region
    $region2: #{tpu_custom_call.1} parent=1 // pred_check
      _
    $region3: #{tpu_custom_call.1} parent=1 // pred_check_branch
      %11 = sbr.rel (0) target = $region5
    $region4: #{tpu_custom_call.1} parent=1 // pred_region
      %13 = vsyncadd [#allocation3], 0
      %s15 = sshll.u32 %s0, 4
      %s16 = int_to_ptr.hbm [resolvable:$true] %s15
      %s17 = sshll.u32 [#allocation2], 4
      %s18 = int_to_ptr.vmem [resolvable:$true] %s17
      %20 = dma.hbm_to_vmem [thread:$0]  %s16, 128, %s18, [#allocation3]
    $region5: #{tpu_custom_call.1} parent=1 // pred_fallthru
      _
    // Predicated region
    $region6: #{tpu_custom_call.1} parent=1 // pred_check
      _
    $region7: #{tpu_custom_call.1} parent=1 // pred_check_branch
      %22 = sbr.rel (0) target = $region9
    $region8: #{tpu_custom_call.1} parent=1 // pred_region
      %24 = vsyncadd [#allocation5], 0
      %s25 = sshll.u32 %s1, 4
      %s26 = int_to_ptr.hbm [resolvable:$true] %s25
      %s27 = sshll.u32 [#allocation4], 4
      %s28 = int_to_ptr.vmem [resolvable:$true] %s27
      %33 = dma.hbm_to_vmem [thread:$0]  %s26, 10496, %s28, [#allocation5], 128, 128, 8
    $region9: #{tpu_custom_call.1} parent=1 // pred_fallthru
      _
    // Predicated region
    $region10: #{tpu_custom_call.1} parent=1 // pred_check
      _
    $region11: #{tpu_custom_call.1} parent=1 // pred_check_branch
      %35 = sbr.rel (0) target = $region13
    $region12: #{tpu_custom_call.1} parent=1 // pred_region
      %37 = vsyncadd [#allocation5], 0
      %s38 = sshll.u32 %s2, 4
      %s39 = int_to_ptr.hbm [resolvable:$true] %s38
      %s40 = sshll.u32 [#allocation6], 4
      %s41 = int_to_ptr.vmem [resolvable:$true] %s40
      %46 = dma.hbm_to_vmem [thread:$0]  %s39, 256, %s41, [#allocation5], 128, 128, 8
    $region13: #{tpu_custom_call.1} parent=1 // pred_fallthru
      _
    // Predicated region
    $region14: #{tpu_custom_call.1} parent=1 // pred_check
      _
    $region15: #{tpu_custom_call.1} parent=1 // pred_check_branch
      %48 = sbr.rel (0) target = $region17
    $region16: #{tpu_custom_call.1} parent=1 // pred_region
      %50 = dma.done [#allocation3], 128
    $region17: #{tpu_custom_call.1} parent=1 // pred_fallthru
      _
    // Predicated region
    $region18: #{tpu_custom_call.1} parent=1 // pred_check
      _
    $region19: #{tpu_custom_call.1} parent=1 // pred_check_branch
      %52 = sbr.rel (0) target = $region21
    $region20: #{tpu_custom_call.1} parent=1 // pred_region
      %54 = dma.done [#allocation5], 10496
    $region21: #{tpu_custom_call.1} parent=1 // pred_fallthru
      _
    // Predicated region
    $region22: #{tpu_custom_call.1} parent=1 // pred_check
      _
    $region23: #{tpu_custom_call.1} parent=1 // pred_check_branch
      %56 = sbr.rel (0) target = $region25
    $region24: #{tpu_custom_call.1} parent=1 // pred_region
      %58 = dma.done [#allocation5], 256
    $region25: #{tpu_custom_call.1} parent=1 // pred_fallthru
      _
    %v59 = vld [vmem:[#allocation2] sm:$0xff]
    %v60 = vld [vmem:[#allocation4] sm:$0xff]
    %v61 = vld [vmem:[#allocation4 + $0x8] sm:$0xff]
    %v62 = vld [vmem:[#allocation6 + $0x2] sm:$0x1]
    %v63 = vperm.slane %v62, 0
    %vm64 = vcmask 130048
    %v66 = vsel %vm64, %v59, 0
    %68 = vmatpush.msra.mxu0 0.0
    %69 = vmatpush.msra.mxu0 0.0
    %70 = vmatpush.msra.mxu0 0.0
    %71 = vmatpush.msra.mxu0 0.0
    %72 = vmatpush.msra.mxu0 0.0
    %73 = vmatpush.msra.mxu0 0.0
    %74 = vmatpush.msra.mxu0 0.0
    %75 = vmatpush.msra.mxu0 0.0
    %76 = vmatpush.msra.mxu0 0.0
    %77 = vmatpush.msra.mxu0 0.0
    %78 = vmatpush.msra.mxu0 0.0
    %79 = vmatpush.msra.mxu0 0.0
    %80 = vmatpush.msra.mxu0 0.0
    %81 = vmatpush.msra.mxu0 0.0
    %82 = vmatpush.msra.mxu0 %v61
    %83 = vmatpush.msra.mxu0 %v60
    %84 = vmatmul.f32.gmra.mxu0 %v66
    %v85 = vpop.f32.mrf.mxu0
    %v86 = vadd.f32 %v63, %v85
    %87 = vdwg.mxu0
    %v88 = vxor.u32 %v86, 2147483648
    %v89 = vmul.f32 %v88, 1.442695
    %v90 = vpow.pop %v89
    %v91 = vadd.f32 %v90, 1.0
    %v92 = vrcp.pop %v91
    %v93 = vmul.f32 %v91, %v92
    %v94 = vsub.f32 1.0, %v93
    %v95 = vmul.f32 %v92, %v94
    %v96 = vadd.f32 %v92, %v95
    %vm97 = vweird.f32 %v91
    %vm98 = vweird.f32 %v92
    %vm99 = vmor %vm97, %vm98
    %v100 = vsel %vm99, %v92, %v96
    %v101 = vand.u32 2147483647, %v91
    %vm102 = vcmp.eq.f32.partialorder %v101, 8.507059e+37
    %v103 = vand.u32 %v91, 2147483648
    %v104 = vor.u32 1.1754944e-38, %v103
    %v105 = vsel %vm102, %v104, %v100
    %v106 = vmul.f32 1.0, %v105
    %v107 = vmul.f32 %v86, %v106
    %v108 = vld [vmem:[#allocation4 + $0x10] sm:$0xff]
    %v109 = vld [vmem:[#allocation4 + $0x18] sm:$0xff]
    %v110 = vld [vmem:[#allocation4 + $0x20] sm:$0xff]
    %v111 = vld [vmem:[#allocation4 + $0x28] sm:$0xff]
    %v112 = vld [vmem:[#allocation4 + $0x30] sm:$0xff]
    %v113 = vld [vmem:[#allocation4 + $0x38] sm:$0xff]
    %v114 = vld [vmem:[#allocation4 + $0x40] sm:$0xff]
    %v115 = vld [vmem:[#allocation4 + $0x48] sm:$0xff]
    %v116 = vld [vmem:[#allocation4 + $0x50] sm:$0xff]
    %v117 = vld [vmem:[#allocation4 + $0x58] sm:$0xff]
    %v118 = vld [vmem:[#allocation4 + $0x60] sm:$0xff]
    %v119 = vld [vmem:[#allocation4 + $0x68] sm:$0xff]
    %v120 = vld [vmem:[#allocation4 + $0x70] sm:$0xff]
    %v121 = vld [vmem:[#allocation4 + $0x78] sm:$0xff]
    %v122 = vld [vmem:[#allocation4 + $0x80] sm:$0xff]
    %v123 = vld [vmem:[#allocation4 + $0x88] sm:$0xff]
    %v124 = vld [vmem:[#allocation6 + $0x3] sm:$0x1]
    %v125 = vperm.slane %v124, 0
    %126 = vmatpush.msra.mxu0 %v123
    %127 = vmatpush.msra.mxu0 %v122
    %128 = vmatpush.msra.mxu0 %v121
    %129 = vmatpush.msra.mxu0 %v120
    %130 = vmatpush.msra.mxu0 %v119
    %131 = vmatpush.msra.mxu0 %v118
    %132 = vmatpush.msra.mxu0 %v117
    %133 = vmatpush.msra.mxu0 %v116
    %134 = vmatpush.msra.mxu0 %v115
    %135 = vmatpush.msra.mxu0 %v114
    %136 = vmatpush.msra.mxu0 %v113
    %137 = vmatpush.msra.mxu0 %v112
    %138 = vmatpush.msra.mxu0 %v111
    %139 = vmatpush.msra.mxu0 %v110
    %140 = vmatpush.msra.mxu0 %v109
    %141 = vmatpush.msra.mxu0 %v108
    %142 = vmatmul.f32.gmra.mxu0 %v107
    %v143 = vpop.f32.mrf.mxu0
    %v144 = vadd.f32 %v125, %v143
    %145 = vdwg.mxu0
    %v146 = vxor.u32 %v144, 2147483648
    %v147 = vmul.f32 %v146, 1.442695
    %v148 = vpow.pop %v147
    %v149 = vadd.f32 %v148, 1.0
    %v150 = vrcp.pop %v149
    %v151 = vmul.f32 %v149, %v150
    %v152 = vsub.f32 1.0, %v151
    %v153 = vmul.f32 %v150, %v152
    %v154 = vadd.f32 %v150, %v153
    %vm155 = vweird.f32 %v149
    %vm156 = vweird.f32 %v150
    %vm157 = vmor %vm155, %vm156
    %v158 = vsel %vm157, %v150, %v154
    %v159 = vand.u32 2147483647, %v149
    %vm160 = vcmp.eq.f32.partialorder %v159, 8.507059e+37
    %v161 = vand.u32 %v149, 2147483648
    %v162 = vor.u32 1.1754944e-38, %v161
    %v163 = vsel %vm160, %v162, %v158
    %v164 = vmul.f32 1.0, %v163
    %v165 = vmul.f32 %v144, %v164
    %v166 = vld [vmem:[#allocation4 + $0x90] sm:$0xff]
    %v167 = vld [vmem:[#allocation4 + $0x98] sm:$0xff]
    %v168 = vld [vmem:[#allocation4 + $0xa0] sm:$0xff]
    %v169 = vld [vmem:[#allocation4 + $0xa8] sm:$0xff]
    %v170 = vld [vmem:[#allocation4 + $0xb0] sm:$0xff]
    %v171 = vld [vmem:[#allocation4 + $0xb8] sm:$0xff]
    %v172 = vld [vmem:[#allocation4 + $0xc0] sm:$0xff]
    %v173 = vld [vmem:[#allocation4 + $0xc8] sm:$0xff]
    %v174 = vld [vmem:[#allocation4 + $0xd0] sm:$0xff]
    %v175 = vld [vmem:[#allocation4 + $0xd8] sm:$0xff]
    %v176 = vld [vmem:[#allocation4 + $0xe0] sm:$0xff]
    %v177 = vld [vmem:[#allocation4 + $0xe8] sm:$0xff]
    %v178 = vld [vmem:[#allocation4 + $0xf0] sm:$0xff]
    %v179 = vld [vmem:[#allocation4 + $0xf8] sm:$0xff]
    %v180 = vld [vmem:[#allocation4 + $0x100] sm:$0xff]
    %v181 = vld [vmem:[#allocation4 + $0x108] sm:$0xff]
    %v182 = vld [vmem:[#allocation6 + $0x4] sm:$0x1]
    %v183 = vperm.slane %v182, 0
    %184 = vmatpush.msra.mxu0 %v181
    %185 = vmatpush.msra.mxu0 %v180
    %186 = vmatpush.msra.mxu0 %v179
    %187 = vmatpush.msra.mxu0 %v178
    %188 = vmatpush.msra.mxu0 %v177
    %189 = vmatpush.msra.mxu0 %v176
    %190 = vmatpush.msra.mxu0 %v175
    %191 = vmatpush.msra.mxu0 %v174
    %192 = vmatpush.msra.mxu0 %v173
    %193 = vmatpush.msra.mxu0 %v172
    %194 = vmatpush.msra.mxu0 %v171
    %195 = vmatpush.msra.mxu0 %v170
    %196 = vmatpush.msra.mxu0 %v169
    %197 = vmatpush.msra.mxu0 %v168
    %198 = vmatpush.msra.mxu0 %v167
    %199 = vmatpush.msra.mxu0 %v166
    %200 = vmatmul.f32.gmra.mxu0 %v165
    %v201 = vpop.f32.mrf.mxu0
    %v202 = vadd.f32 %v183, %v201
    %203 = vdwg.mxu0
    %v204 = vxor.u32 %v202, 2147483648
    %v205 = vmul.f32 %v204, 1.442695
    %v206 = vpow.pop %v205
    %v207 = vadd.f32 %v206, 1.0
    %v208 = vrcp.pop %v207
    %v209 = vmul.f32 %v207, %v208
    %v210 = vsub.f32 1.0, %v209
    %v211 = vmul.f32 %v208, %v210
    %v212 = vadd.f32 %v208, %v211
    %vm213 = vweird.f32 %v207
    %vm214 = vweird.f32 %v208
    %vm215 = vmor %vm213, %vm214
    %v216 = vsel %vm215, %v208, %v212
    %v217 = vand.u32 2147483647, %v207
    %vm218 = vcmp.eq.f32.partialorder %v217, 8.507059e+37
    %v219 = vand.u32 %v207, 2147483648
    %v220 = vor.u32 1.1754944e-38, %v219
    %v221 = vsel %vm218, %v220, %v216
    %v222 = vmul.f32 1.0, %v221
    %v223 = vmul.f32 %v202, %v222
    %v224 = vld [vmem:[#allocation6] sm:$0x1]
    %225 = vset.pattern.permute.xlu0 0
    %226 = vperm.xlu0 %225, %v59
    %v227 = vpop.permute.xlu0 %226
    %v229 = vperm.slane %v224, 0
    %v230 = vmul.f32 %v227, %v229
    %v231 = vld [vmem:[#allocation6 + $0x1] sm:$0x1]
    %232 = vset.pattern.permute.xlu0 1
    %233 = vperm.xlu0 %232, %v59
    %v234 = vpop.permute.xlu0 %233
    %v236 = vperm.slane %v231, 0
    %v237 = vmul.f32 %v234, %v236
    %v238 = vadd.f32 %v230, %v237
    %v239 = vld [vmem:[#allocation4 + $0x110] sm:$0xff]
    %v240 = vld [vmem:[#allocation4 + $0x118] sm:$0xff]
    %v241 = vld [vmem:[#allocation4 + $0x120] sm:$0xff]
    %v242 = vld [vmem:[#allocation4 + $0x128] sm:$0xff]
    %v243 = vld [vmem:[#allocation4 + $0x130] sm:$0xff]
    %v244 = vld [vmem:[#allocation4 + $0x138] sm:$0xff]
    %v245 = vld [vmem:[#allocation4 + $0x140] sm:$0xff]
    %v246 = vld [vmem:[#allocation4 + $0x148] sm:$0xff]
    %v247 = vld [vmem:[#allocation4 + $0x150] sm:$0xff]
    %v248 = vld [vmem:[#allocation4 + $0x158] sm:$0xff]
    %v249 = vld [vmem:[#allocation4 + $0x160] sm:$0xff]
    %v250 = vld [vmem:[#allocation4 + $0x168] sm:$0xff]
    %v251 = vld [vmem:[#allocation4 + $0x170] sm:$0xff]
    %v252 = vld [vmem:[#allocation4 + $0x178] sm:$0xff]
    %v253 = vld [vmem:[#allocation4 + $0x180] sm:$0xff]
    %v254 = vld [vmem:[#allocation4 + $0x188] sm:$0xff]
    %255 = vmatpush.msra.mxu0 %v254
    %256 = vmatpush.msra.mxu0 %v253
    %257 = vmatpush.msra.mxu0 %v252
    %258 = vmatpush.msra.mxu0 %v251
    %259 = vmatpush.msra.mxu0 %v250
    %260 = vmatpush.msra.mxu0 %v249
    %261 = vmatpush.msra.mxu0 %v248
    %262 = vmatpush.msra.mxu0 %v247
    %263 = vmatpush.msra.mxu0 %v246
    %264 = vmatpush.msra.mxu0 %v245
    %265 = vmatpush.msra.mxu0 %v244
    %266 = vmatpush.msra.mxu0 %v243
    %267 = vmatpush.msra.mxu0 %v242
    %268 = vmatpush.msra.mxu0 %v241
    %269 = vmatpush.msra.mxu0 %v240
    %270 = vmatpush.msra.mxu0 %v239
    %271 = vmatmul.f32.gmra.mxu0 %v223
    %v272 = vpop.f32.mrf.mxu0
    %v273 = vadd.f32 %v238, %v272
    %274 = vdwg.mxu0
    %v275 = vld [vmem:[#allocation6 + $0x5] sm:$0x1]
    %v276 = vperm.slane %v275, 0
    %v277 = vadd.f32 %v273, %v276
    %v278 = vxor.u32 %v277, 2147483648
    %v279 = vmul.f32 %v278, 1.442695
    %v280 = vpow.pop %v279
    %v281 = vadd.f32 %v280, 1.0
    %v282 = vrcp.pop %v281
    %v283 = vmul.f32 %v281, %v282
    %v284 = vsub.f32 1.0, %v283
    %v285 = vmul.f32 %v282, %v284
    %v286 = vadd.f32 %v282, %v285
    %vm287 = vweird.f32 %v281
    %vm288 = vweird.f32 %v282
    %vm289 = vmor %vm287, %vm288
    %v290 = vsel %vm289, %v282, %v286
    %v291 = vand.u32 2147483647, %v281
    %vm292 = vcmp.eq.f32.partialorder %v291, 8.507059e+37
    %v293 = vand.u32 %v281, 2147483648
    %v294 = vor.u32 1.1754944e-38, %v293
    %v295 = vsel %vm292, %v294, %v290
    %v296 = vmul.f32 1.0, %v295
    %v297 = vmul.f32 %v277, %v296
    %v298 = vld [vmem:[#allocation4 + $0x190] sm:$0xff]
    %v299 = vld [vmem:[#allocation4 + $0x198] sm:$0xff]
    %v300 = vld [vmem:[#allocation4 + $0x1a0] sm:$0xff]
    %v301 = vld [vmem:[#allocation4 + $0x1a8] sm:$0xff]
    %v302 = vld [vmem:[#allocation4 + $0x1b0] sm:$0xff]
    %v303 = vld [vmem:[#allocation4 + $0x1b8] sm:$0xff]
    %v304 = vld [vmem:[#allocation4 + $0x1c0] sm:$0xff]
    %v305 = vld [vmem:[#allocation4 + $0x1c8] sm:$0xff]
    %v306 = vld [vmem:[#allocation4 + $0x1d0] sm:$0xff]
    %v307 = vld [vmem:[#allocation4 + $0x1d8] sm:$0xff]
    %v308 = vld [vmem:[#allocation4 + $0x1e0] sm:$0xff]
    %v309 = vld [vmem:[#allocation4 + $0x1e8] sm:$0xff]
    %v310 = vld [vmem:[#allocation4 + $0x1f0] sm:$0xff]
    %v311 = vld [vmem:[#allocation4 + $0x1f8] sm:$0xff]
    %v312 = vld [vmem:[#allocation4 + $0x200] sm:$0xff]
    %v313 = vld [vmem:[#allocation4 + $0x208] sm:$0xff]
    %v314 = vld [vmem:[#allocation6 + $0x6] sm:$0x1]
    %v315 = vperm.slane %v314, 0
    %316 = vmatpush.msra.mxu0 %v313
    %317 = vmatpush.msra.mxu0 %v312
    %318 = vmatpush.msra.mxu0 %v311
    %319 = vmatpush.msra.mxu0 %v310
    %320 = vmatpush.msra.mxu0 %v309
    %321 = vmatpush.msra.mxu0 %v308
    %322 = vmatpush.msra.mxu0 %v307
    %323 = vmatpush.msra.mxu0 %v306
    %324 = vmatpush.msra.mxu0 %v305
    %325 = vmatpush.msra.mxu0 %v304
    %326 = vmatpush.msra.mxu0 %v303
    %327 = vmatpush.msra.mxu0 %v302
    %328 = vmatpush.msra.mxu0 %v301
    %329 = vmatpush.msra.mxu0 %v300
    %330 = vmatpush.msra.mxu0 %v299
    %331 = vmatpush.msra.mxu0 %v298
    %332 = vmatmul.f32.gmra.mxu0 %v297
    %v333 = vpop.f32.mrf.mxu0
    %v334 = vadd.f32 %v315, %v333
    %335 = vdwg.mxu0
    %v336 = vxor.u32 %v334, 2147483648
    %v337 = vmul.f32 %v336, 1.442695
    %v338 = vpow.pop %v337
    %v339 = vadd.f32 %v338, 1.0
    %v340 = vrcp.pop %v339
    %v341 = vmul.f32 %v339, %v340
    %v342 = vsub.f32 1.0, %v341
    %v343 = vmul.f32 %v340, %v342
    %v344 = vadd.f32 %v340, %v343
    %vm345 = vweird.f32 %v339
    %vm346 = vweird.f32 %v340
    %vm347 = vmor %vm345, %vm346
    %v348 = vsel %vm347, %v340, %v344
    %v349 = vand.u32 2147483647, %v339
    %vm350 = vcmp.eq.f32.partialorder %v349, 8.507059e+37
    %v351 = vand.u32 %v339, 2147483648
    %v352 = vor.u32 1.1754944e-38, %v351
    %v353 = vsel %vm350, %v352, %v348
    %v354 = vmul.f32 1.0, %v353
    %v355 = vmul.f32 %v334, %v354
    %v356 = vld [vmem:[#allocation4 + $0x210] sm:$0xff]
    %v357 = vld [vmem:[#allocation4 + $0x218] sm:$0xff]
    %v358 = vld [vmem:[#allocation4 + $0x220] sm:$0xff]
    %v359 = vld [vmem:[#allocation4 + $0x228] sm:$0xff]
    %v360 = vld [vmem:[#allocation4 + $0x230] sm:$0xff]
    %v361 = vld [vmem:[#allocation4 + $0x238] sm:$0xff]
    %v362 = vld [vmem:[#allocation4 + $0x240] sm:$0xff]
    %v363 = vld [vmem:[#allocation4 + $0x248] sm:$0xff]
    %v364 = vld [vmem:[#allocation4 + $0x250] sm:$0xff]
    %v365 = vld [vmem:[#allocation4 + $0x258] sm:$0xff]
    %v366 = vld [vmem:[#allocation4 + $0x260] sm:$0xff]
    %v367 = vld [vmem:[#allocation4 + $0x268] sm:$0xff]
    %v368 = vld [vmem:[#allocation4 + $0x270] sm:$0xff]
    %v369 = vld [vmem:[#allocation4 + $0x278] sm:$0xff]
    %v370 = vld [vmem:[#allocation4 + $0x280] sm:$0xff]
    %v371 = vld [vmem:[#allocation4 + $0x288] sm:$0xff]
    %v372 = vld [vmem:[#allocation6 + $0x7] sm:$0x1]
    %v373 = vperm.slane %v372, 0
    %374 = vmatpush.msra.mxu0 %v371
    %375 = vmatpush.msra.mxu0 %v370
    %376 = vmatpush.msra.mxu0 %v369
    %377 = vmatpush.msra.mxu0 %v368
    %378 = vmatpush.msra.mxu0 %v367
    %379 = vmatpush.msra.mxu0 %v366
    %380 = vmatpush.msra.mxu0 %v365
    %381 = vmatpush.msra.mxu0 %v364
    %382 = vmatpush.msra.mxu0 %v363
    %383 = vmatpush.msra.mxu0 %v362
    %384 = vmatpush.msra.mxu0 %v361
    %385 = vmatpush.msra.mxu0 %v360
    %386 = vmatpush.msra.mxu0 %v359
    %387 = vmatpush.msra.mxu0 %v358
    %388 = vmatpush.msra.mxu0 %v357
    %389 = vmatpush.msra.mxu0 %v356
    %390 = vmatmul.f32.gmra.mxu0 %v355
    %v391 = vpop.f32.mrf.mxu0
    %v392 = vadd.f32 %v373, %v391
    %393 = vdwg.mxu0
    %v394 = vxor.u32 %v392, 2147483648
    %v395 = vmul.f32 %v394, 1.442695
    %v396 = vpow.pop %v395
    %v397 = vadd.f32 %v396, 1.0
    %v398 = vrcp.pop %v397
    %v399 = vmul.f32 %v397, %v398
    %v400 = vsub.f32 1.0, %v399
    %v401 = vmul.f32 %v398, %v400
    %v402 = vadd.f32 %v398, %v401
    %vm403 = vweird.f32 %v397
    %vm404 = vweird.f32 %v398
    %vm405 = vmor %vm403, %vm404
    %v406 = vsel %vm405, %v398, %v402
    %v407 = vand.u32 2147483647, %v397
    %vm408 = vcmp.eq.f32.partialorder %v407, 8.507059e+37
    %v409 = vand.u32 %v397, 2147483648
    %v410 = vor.u32 1.1754944e-38, %v409
    %v411 = vsel %vm408, %v410, %v406
    %v412 = vmul.f32 1.0, %v411
    %v413 = vmul.f32 %v392, %v412
    %v414 = vld [vmem:[#allocation6 + $0x8] sm:$0x1]
    %v415 = vperm.slane %v414, 0
    %v416 = vmul.f32 %v413, %v415
    %417 = vadd.xlane.f32.xlu0 %v416
    %v418 = vpop.xlane.xlu0 %417
    %v419 = vld [vmem:[#allocation6 + $0x9] sm:$0x1]
    %v420 = vperm.slane %v419, 0
    %v421 = vadd.f32 %v418, %v420
    %vm422 = vcmask 7168
    %423 = vst.msk [vmem:[%s3] sm:$0xff] %vm422, %v421
    // Predicated region
    $region26: #{tpu_custom_call.1} parent=1 // pred_check
      _
    $region27: #{tpu_custom_call.1} parent=1 // pred_check_branch
      %425 = sbr.rel (0) target = $region29
    $region28: #{tpu_custom_call.1} parent=1 // pred_region
      _
    $region29: #{tpu_custom_call.1} parent=1 // pred_fallthru
      _
    // Predicated region
    $region30: #{tpu_custom_call.1} parent=1 // pred_check
      _
    $region31: #{tpu_custom_call.1} parent=1 // pred_check_branch
      %427 = sbr.rel (0) target = $region33
    $region32: #{tpu_custom_call.1} parent=1 // pred_region
      _
    $region33: #{tpu_custom_call.1} parent=1 // pred_fallthru
      _
    %428 = vsyncpa [#allocation3], 1
    %429 = vsyncpa [#allocation5], 1

</llo_original>
